<compile_context>
chip_gen: v7x
topology: tpu7x:2x2x1
jax: 0.10.0
libtpu: 0.0.40
codegen_flags: <defaults>
</compile_context>

<pallas_src>
import functools

import jax
import jax.numpy as jnp
from jax.experimental import pallas as pl
from jax.experimental.pallas import tpu as pltpu


def _emd_kernel(inv_total, tgt_ref, est_ref, upper_ref, out_ref):
    """Accumulate sum((cumsum(est - tgt))**2) over batch tiles; finalize sqrt(mean)."""
    i = pl.program_id(0)

    @pl.when(i == 0)
    def _init():
        out_ref[...] = jnp.zeros_like(out_ref)

    # Inputs were cast to f32 in the wrapper, so the subtraction is full precision.
    diff = est_ref[...] - tgt_ref[...]                      # (tile_rows, width)

    # Block-diagonal upper-triangular matmul == per-sample cumsum along classes.
    cdf_diff = jnp.dot(diff, upper_ref[...],
                       preferred_element_type=jnp.float32)  # (tile_rows, width)

    out_ref[...] += jnp.sum(cdf_diff * cdf_diff, keepdims=True)  # (1, 1)

    @pl.when(i == pl.num_programs(0) - 1)
    def _finalize():
        out_ref[...] = jnp.sqrt(out_ref[...] * inv_total)


def _round_up(x, m):
    return -(-x // m) * m


def _block_diag_upper(num_blocks, c, padded_width):
    """(padded_width, padded_width) matrix: `num_blocks` CxC upper-triangular ones
    blocks on the diagonal, zero elsewhere (including the lane-padding band)."""
    lw = num_blocks * c
    row = jax.lax.broadcasted_iota(jnp.int32, (padded_width, padded_width), 0)
    col = jax.lax.broadcasted_iota(jnp.int32, (padded_width, padded_width), 1)
    mask = ((row // c) == (col // c)) & (row <= col) & (row < lw) & (col < lw)
    return mask.astype(jnp.float32)


def emd_loss(p_target, p_estimate, *, rows_per_tile=1024):
    assert p_target.shape == p_estimate.shape
    assert p_target.ndim == 2, "EMDLoss expects (batch, classes)"
    assert rows_per_tile % 8 == 0
    B, C = p_target.shape
    total = B * C  # logical element count for the mean (padding excluded)

    # Lane packing: put `pack` batch rows side by side on the lane axis, then
    # pad the packed width up to a multiple of 128 so rows are lane-dense.
    pack = max(1, 128 // C)
    logical_width = pack * C
    width = _round_up(logical_width, 128)

    rows = -(-B // pack)                      # packed rows needed to hold B samples
    if rows <= rows_per_tile:
        tile_rows = _round_up(rows, 8)        # single sublane-aligned tile
        num_tiles = 1
    else:
        tile_rows = rows_per_tile
        num_tiles = pl.cdiv(rows, tile_rows)
    rows_padded = num_tiles * tile_rows
    b_padded = rows_padded * pack

    def prep(p):
        p = p.astype(jnp.float32)             # cast BEFORE subtraction (precision)
        if b_padded != B:
            # Zero rows contribute exactly zero to the sum of squares.
            p = jnp.pad(p, ((0, b_padded - B), (0, 0)))
        p = p.reshape(rows_padded, logical_width)
        if width != logical_width:
            p = jnp.pad(p, ((0, 0), (0, width - logical_width)))
        return p

    tgt = prep(p_target)
    est = prep(p_estimate)
    upper = _block_diag_upper(pack, C, width)  # built once, constant across the grid

    kernel = functools.partial(_emd_kernel, 1.0 / float(total))
    out = pl.pallas_call(
        kernel,
        out_shape=jax.ShapeDtypeStruct((1, 1), jnp.float32),
        grid_spec=pltpu.PrefetchScalarGridSpec(
            num_scalar_prefetch=0,
            grid=(num_tiles,),
            in_specs=[
                pl.BlockSpec((tile_rows, width), lambda i: (i, 0)),
                pl.BlockSpec((tile_rows, width), lambda i: (i, 0)),
                pl.BlockSpec((width, width), lambda i: (0, 0)),   # resident constant
            ],
            out_specs=pl.BlockSpec((1, 1), lambda i: (0, 0)),     # resident accumulator
        ),
        compiler_params=pltpu.CompilerParams(
            dimension_semantics=("arbitrary",),
        ),
    )(tgt, est, upper)
    return out[0, 0]


def _emd_loss_ref(p_target, p_estimate):
    cdf_t = jnp.cumsum(p_target.astype(jnp.float32), axis=1)
    cdf_e = jnp.cumsum(p_estimate.astype(jnp.float32), axis=1)
    d = cdf_e - cdf_t
    return jnp.sqrt(jnp.mean(jnp.abs(d) ** 2))


if __name__ == "__main__":
    key = jax.random.PRNGKey(0)

    def make_inputs(b, c, k):
        k1, k2 = jax.random.split(k)
        pt = jax.nn.softmax(jax.random.normal(k1, (b, c), jnp.float32), axis=1)
        pe = jax.nn.softmax(jax.random.normal(k2, (b, c), jnp.float32), axis=1)
        return pt, pe

    k_a, k_b, k_c = jax.random.split(key, 3)
    emd = jax.jit(emd_loss)

    # NIMA-sized case: (batch=8, classes=16) -> pack=8, one lane-dense 128-wide tile.
    pt, pe = make_inputs(8, 16, k_a)
    loss = jax.block_until_ready(emd(pt, pe))
    ref = _emd_loss_ref(pt, pe)
    assert jnp.allclose(loss, ref, rtol=1e-4, atol=1e-5), (loss, ref)

    # Ragged case exercising lane packing + zero padding: (batch=37, classes=10).
    pt, pe = make_inputs(37, 10, k_b)
    loss = jax.block_until_ready(emd(pt, pe))
    ref = _emd_loss_ref(pt, pe)
    assert jnp.allclose(loss, ref, rtol=1e-4, atol=1e-5), (loss, ref)

    # Multi-tile case exercising the grid accumulator: (batch=40000, classes=10).
    pt, pe = make_inputs(40000, 10, k_c)
    loss = jax.block_until_ready(emd(pt, pe))
    ref = _emd_loss_ref(pt, pe)
    assert jnp.allclose(loss, ref, rtol=1e-4, atol=1e-5), (loss, ref)

    print("KERNEL_OK")
</pallas_src>

<mosaic_0001>
module attributes {stable_mosaic.version = 11 : i64} {
  func.func @_emd_kernel(%arg0: i32, %arg1: memref<8x128xf32, #tpu.memory_space<vmem>>, %arg2: memref<8x128xf32, #tpu.memory_space<vmem>>, %arg3: memref<128x128xf32, #tpu.memory_space<vmem>>, %arg4: memref<1x1xf32, #tpu.memory_space<vmem>>) attributes {dimension_semantics = [#tpu.dimension_semantics<arbitrary>], iteration_bounds = array<i64: 1>, scalar_prefetch = 0 : i64, scratch_operands = 0 : i64, tpu.core_type = #tpu.core_type<tc>, window_params = [{transform_indices = @transform_0, window_bounds = array<i64: 8, 128>}, {transform_indices = @transform_1, window_bounds = array<i64: 8, 128>}, {pipeline_mode = #tpu.pipeline_mode<synchronous>, transform_indices = @transform_2, window_bounds = array<i64: 128, 128>}, {pipeline_mode = #tpu.pipeline_mode<synchronous>, transform_indices = @transform_3, window_bounds = array<i64: 1, 1>}]} {
    %c0_i32 = arith.constant 0 : i32
    %0 = arith.cmpi eq, %arg0, %c0_i32 : i32
    %1 = arith.extui %0 : i1 to i32
    %c0_i32_0 = arith.constant 0 : i32
    %2 = arith.cmpi ne, %1, %c0_i32_0 : i32
    scf.if %2 {
      %cst_13 = arith.constant 0.000000e+00 : f32
      %20 = vector.broadcast %cst_13 : f32 to vector<1x1xf32>
      %c0_14 = arith.constant 0 : index
      %c0_15 = arith.constant 0 : index
      %21 = vector.load %arg4[%c0_14, %c0_15] : memref<1x1xf32, #tpu.memory_space<vmem>>, vector<1x1xf32>
      tpu.vector_store %arg4[%c0_14, %c0_15], %20 {strides = array<i32>} : memref<1x1xf32, #tpu.memory_space<vmem>>, vector<1x1xf32>,
    } else {
    }
    %c0 = arith.constant 0 : index
    %c0_1 = arith.constant 0 : index
    %3 = vector.load %arg2[%c0, %c0_1] : memref<8x128xf32, #tpu.memory_space<vmem>>, vector<8x128xf32>
    %c0_2 = arith.constant 0 : index
    %c0_3 = arith.constant 0 : index
    %4 = vector.load %arg1[%c0_2, %c0_3] : memref<8x128xf32, #tpu.memory_space<vmem>>, vector<8x128xf32>
    %5 = arith.subf %3, %4 : vector<8x128xf32>
    %c0_4 = arith.constant 0 : index
    %c0_5 = arith.constant 0 : index
    %6 = vector.load %arg3[%c0_4, %c0_5] : memref<128x128xf32, #tpu.memory_space<vmem>>, vector<128x128xf32>
    %cst = arith.constant dense<0.000000e+00> : vector<8x128xf32>
    %7 = tpu.matmul %5, %6, %cst {dimension_numbers = #tpu.dot_dimension_numbers<[1], [0], [0], [1], [0, 0, 1, 1], [], []>} : vector<8x128xf32>, vector<128x128xf32>, vector<8x128xf32> -> vector<8x128xf32>
    %c0_6 = arith.constant 0 : index
    %c0_7 = arith.constant 0 : index
    %8 = vector.load %arg4[%c0_6, %c0_7] : memref<1x1xf32, #tpu.memory_space<vmem>>, vector<1x1xf32>
    %9 = arith.mulf %7, %7 : vector<8x128xf32>
    %10 = vector.shape_cast %9 : vector<8x128xf32> to vector<1x8x128xf32>
    %cst_8 = arith.constant dense<0.000000e+00> : vector<1xf32>
    %11 = vector.multi_reduction <add>, %10, %cst_8 [1, 2] : vector<1x8x128xf32> to vector<1xf32>
    %12 = vector.shape_cast %11 : vector<1xf32> to vector<1x1x1xf32>
    %13 = vector.extract %12[0, 0, 0] : f32 from vector<1x1x1xf32>
    %14 = vector.broadcast %13 : f32 to vector<1x1xf32>
    %15 = arith.addf %8, %14 : vector<1x1xf32>
    %c0_9 = arith.constant 0 : index
    %c0_10 = arith.constant 0 : index
    %16 = vector.load %arg4[%c0_9, %c0_10] : memref<1x1xf32, #tpu.memory_space<vmem>>, vector<1x1xf32>
    tpu.vector_store %arg4[%c0_9, %c0_10], %15 {strides = array<i32>} : memref<1x1xf32, #tpu.memory_space<vmem>>, vector<1x1xf32>,
    %c0_i32_11 = arith.constant 0 : i32
    %17 = arith.cmpi eq, %arg0, %c0_i32_11 : i32
    %18 = arith.extui %17 : i1 to i32
    %c0_i32_12 = arith.constant 0 : i32
    %19 = arith.cmpi ne, %18, %c0_i32_12 : i32
    scf.if %19 {
      %c0_13 = arith.constant 0 : index
      %c0_14 = arith.constant 0 : index
      %20 = vector.load %arg4[%c0_13, %c0_14] : memref<1x1xf32, #tpu.memory_space<vmem>>, vector<1x1xf32>
      %cst_15 = arith.constant 7.812500e-03 : f32
      %21 = vector.broadcast %cst_15 : f32 to vector<1x1xf32>
      %22 = arith.mulf %20, %21 : vector<1x1xf32>
      %23 = math.sqrt %22 : vector<1x1xf32>
      %c0_16 = arith.constant 0 : index
      %c0_17 = arith.constant 0 : index
      %24 = vector.load %arg4[%c0_16, %c0_17] : memref<1x1xf32, #tpu.memory_space<vmem>>, vector<1x1xf32>
      tpu.vector_store %arg4[%c0_16, %c0_17], %23 {strides = array<i32>} : memref<1x1xf32, #tpu.memory_space<vmem>>, vector<1x1xf32>,
    } else {
    }
    return
  }
  func.func @transform_0(%arg0: i32) -> (i32, i32) {
    %c0_i32 = arith.constant 0 : i32
    %c0_i32_0 = arith.constant 0 : i32
    return %arg0, %c0_i32 : i32, i32
  }
  func.func @transform_1(%arg0: i32) -> (i32, i32) {
    %c0_i32 = arith.constant 0 : i32
    %c0_i32_0 = arith.constant 0 : i32
    return %arg0, %c0_i32 : i32, i32
  }
  func.func @transform_2(%arg0: i32) -> (i32, i32) {
    %c0_i32 = arith.constant 0 : i32
    %c0_i32_0 = arith.constant 0 : i32
    %c0_i32_1 = arith.constant 0 : i32
    return %c0_i32, %c0_i32_0 : i32, i32
  }
  func.func @transform_3(%arg0: i32) -> (i32, i32) {
    %c0_i32 = arith.constant 0 : i32
    %c0_i32_0 = arith.constant 0 : i32
    %c0_i32_1 = arith.constant 0 : i32
    return %c0_i32, %c0_i32_0 : i32, i32
  }
}

</mosaic_0001>

<llo_original>
// kernel: emd_loss.1
$region0: #{emd_loss.1}
  #allocation0 [shape = 'u32[]', space=smem, size = 0x4, offset = 0x4, fixed_abs, tag = 'smem constant byte address 0x4 - core index']
  #allocation1 [shape = 'u32[144,128]{1,0:T(1,128)}', space=vmem, size = 0x12000, scoped, tag = 'internal scratch']
  %s0 = inlined_call_operand.vmem [shape: f32[8,128], index: 0, kind: input, shape index: {}]
  %s1 = inlined_call_operand.vmem [shape: f32[8,128], index: 1, kind: input, shape index: {}]
  %s2 = inlined_call_operand.vmem [shape: f32[128,128], index: 2, kind: input, shape index: {}]
  %s3 = inlined_call_operand.hbm [shape: f32[1,1], index: 3, kind: output, shape index: {}]
  %s4 = sld [smem:[#allocation0]]
  $region30: #{emd_loss.1} parent=0
    _
  %s6 = ssub.s32 1, %s4
  %s7 = scalar_select 0, %s6, %s4
  $region1: #{emd_loss.1} parent=0
    #allocation2 [shape = 'u8[512]{0}', space=vmem, size = 0x400, scoped, tag = 'output window, operand 0, single buffered']
    #allocation3 [shape = 's32[1]{0}', space=sflag, size = 0x4, scoped, tag = 'scoped memory for emd_loss.1']
    %8 = vsyncpa [#allocation3], 0
    // Predicated region
    $region2: #{emd_loss.1} parent=1 // pred_check
      _
    $region3: #{emd_loss.1} parent=1 // pred_check_branch
      %10 = sbr.rel (0) target = $region5
    $region4: #{emd_loss.1} parent=1 // pred_region
      _
    $region5: #{emd_loss.1} parent=1 // pred_fallthru
      _
    // Predicated region
    $region6: #{emd_loss.1} parent=1 // pred_check
      _
    $region7: #{emd_loss.1} parent=1 // pred_check_branch
      %12 = sbr.rel (0) target = $region9
    $region8: #{emd_loss.1} parent=1 // pred_region
      _
    $region9: #{emd_loss.1} parent=1 // pred_fallthru
      _
    // Predicated region
    $region10: #{emd_loss.1} parent=1 // pred_check
      _
    $region11: #{emd_loss.1} parent=1 // pred_check_branch
      %14 = sbr.rel (0) target = $region13
    $region12: #{emd_loss.1} parent=1 // pred_region
      _
    $region13: #{emd_loss.1} parent=1 // pred_fallthru
      _
    %p15 = scmp.eq.s32.totalorder 0, 0
    // Predicated region
    $region14: #{emd_loss.1} parent=1 // pred_check
      %p16 = pneg %p15
    $region15: #{emd_loss.1} parent=1 // pred_check_branch
      %18 = sbr.rel (%p16) target = $region17
    $region16: #{emd_loss.1} parent=1 // pred_region
      %vm19 = vcmask 0
      %20 = vst.msk [vmem:[#allocation2] sm:$0x1] %vm19, 0.0
    $region17: #{emd_loss.1} parent=1 // pred_fallthru
      _
    %v21 = vld [vmem:[%s1] sm:$0xff]
    %v22 = vld [vmem:[%s0] sm:$0xff]
    %v23 = vsub.f32 %v21, %v22
    %v24 = vld [vmem:[%s2] sm:$0xff]
    %v25 = vld [vmem:[%s2 + $0x8] sm:$0xff]
    %v26 = vld [vmem:[%s2 + $0x10] sm:$0xff]
    %v27 = vld [vmem:[%s2 + $0x18] sm:$0xff]
    %v28 = vld [vmem:[%s2 + $0x20] sm:$0xff]
    %v29 = vld [vmem:[%s2 + $0x28] sm:$0xff]
    %v30 = vld [vmem:[%s2 + $0x30] sm:$0xff]
    %v31 = vld [vmem:[%s2 + $0x38] sm:$0xff]
    %v32 = vld [vmem:[%s2 + $0x40] sm:$0xff]
    %v33 = vld [vmem:[%s2 + $0x48] sm:$0xff]
    %v34 = vld [vmem:[%s2 + $0x50] sm:$0xff]
    %v35 = vld [vmem:[%s2 + $0x58] sm:$0xff]
    %v36 = vld [vmem:[%s2 + $0x60] sm:$0xff]
    %v37 = vld [vmem:[%s2 + $0x68] sm:$0xff]
    %v38 = vld [vmem:[%s2 + $0x70] sm:$0xff]
    %v39 = vld [vmem:[%s2 + $0x78] sm:$0xff]
    %40 = vmatprep.subr.mxu0 0.0
    %41 = vmatpush1.msra.mxu0 %v24
    %42 = vmatprep.subr.mxu0 0.0
    %43 = vmatpush1.msra.mxu0 %v25
    %44 = vmatprep.subr.mxu0 0.0
    %45 = vmatpush1.msra.mxu0 %v26
    %46 = vmatprep.subr.mxu0 0.0
    %47 = vmatpush1.msra.mxu0 %v27
    %48 = vmatprep.subr.mxu0 0.0
    %49 = vmatpush1.msra.mxu0 %v28
    %50 = vmatprep.subr.mxu0 0.0
    %51 = vmatpush1.msra.mxu0 %v29
    %52 = vmatprep.subr.mxu0 0.0
    %53 = vmatpush1.msra.mxu0 %v30
    %54 = vmatprep.subr.mxu0 0.0
    %55 = vmatpush1.msra.mxu0 %v31
    %56 = vmatprep.subr.mxu0 0.0
    %57 = vmatpush1.msra.mxu0 %v32
    %58 = vmatprep.subr.mxu0 0.0
    %59 = vmatpush1.msra.mxu0 %v33
    %60 = vmatprep.subr.mxu0 0.0
    %61 = vmatpush1.msra.mxu0 %v34
    %62 = vmatprep.subr.mxu0 0.0
    %63 = vmatpush1.msra.mxu0 %v35
    %64 = vmatprep.subr.mxu0 0.0
    %65 = vmatpush1.msra.mxu0 %v36
    %66 = vmatprep.subr.mxu0 0.0
    %67 = vmatpush1.msra.mxu0 %v37
    %68 = vmatprep.subr.mxu0 0.0
    %69 = vmatpush1.msra.mxu0 %v38
    %70 = vmatprep.subr.mxu0 0.0
    %71 = vmatpush1.msra.mxu0 %v39
    %72 = vmatprep.subr.mxu0 0.0
    %73 = vmatpush1.msra.mxu0 0.0
    %74 = vmatprep.subr.mxu0 0.0
    %75 = vmatpush1.msra.mxu0 0.0
    %76 = vmatprep.subr.mxu0 0.0
    %77 = vmatpush1.msra.mxu0 0.0
    %78 = vmatprep.subr.mxu0 0.0
    %79 = vmatpush1.msra.mxu0 0.0
    %80 = vmatprep.subr.mxu0 0.0
    %81 = vmatpush1.msra.mxu0 0.0
    %82 = vmatprep.subr.mxu0 0.0
    %83 = vmatpush1.msra.mxu0 0.0
    %84 = vmatprep.subr.mxu0 0.0
    %85 = vmatpush1.msra.mxu0 0.0
    %86 = vmatprep.subr.mxu0 0.0
    %87 = vmatpush1.msra.mxu0 0.0
    %88 = vmatprep.subr.mxu0 0.0
    %89 = vmatpush1.msra.mxu0 0.0
    %90 = vmatprep.subr.mxu0 0.0
    %91 = vmatpush1.msra.mxu0 0.0
    %92 = vmatprep.subr.mxu0 0.0
    %93 = vmatpush1.msra.mxu0 0.0
    %94 = vmatprep.subr.mxu0 0.0
    %95 = vmatpush1.msra.mxu0 0.0
    %96 = vmatprep.subr.mxu0 0.0
    %97 = vmatpush1.msra.mxu0 0.0
    %98 = vmatprep.subr.mxu0 0.0
    %99 = vmatpush1.msra.mxu0 0.0
    %100 = vmatprep.subr.mxu0 0.0
    %101 = vmatpush1.msra.mxu0 0.0
    %102 = vmatprep.subr.mxu0 0.0
    %103 = vmatpush1.msra.mxu0 0.0
    %104 = vmatprep.mubr.f32.mxu0 0.0
    %105 = vmatmul.mubr.f32.gmra.mrb[0].mxu0 %v23
    %v106 = vpop.f32.mrb[0].mxu0
    %v107 = vadd.f32 0.0, %v106
    %v108 = vpop.f32.mrb[0].mxu0
    %109 = vdwg.mxu0
    %v110 = vld [vmem:[#allocation2] sm:$0x1]
    %v111 = vmul.f32 %v107, %v107
    %112 = vadd.xlane.f32.xlu0 %v111
    %v113 = vpop.xlane.xlu0 %112
    %v114 = vrot.slane %v113, 4
    %v115 = vadd.f32 %v113, %v114
    %v116 = vrot.slane %v115, 2
    %v117 = vadd.f32 %v115, %v116
    %v118 = vrot.slane %v117, 1
    %v119 = vadd.f32 %v117, %v118
    %s120 = vtos %v119
    %v121 = vstv %s120
    %v122 = vadd.f32 %v110, %v121
    %vm123 = vcmask 0
    %124 = vst.msk [vmem:[#allocation2] sm:$0x1] %vm123, %v122
    // Predicated region
    $region18: #{emd_loss.1} parent=1 // pred_check
      %p125 = pneg %p15
    $region19: #{emd_loss.1} parent=1 // pred_check_branch
      %127 = sbr.rel (%p125) target = $region21
    $region20: #{emd_loss.1} parent=1 // pred_region
      %v128 = vld [vmem:[#allocation2] sm:$0x1]
      %v129 = vmul.f32 %v128, 0.0078125
      %v130 = vrsqrt.pop %v129
      %v131 = vmul.f32 %v129, %v130
      %vm132 = vcmp.eq.f32.partialorder %v129, inf
      %v133 = vsel %vm132, %v129, %v131
      %vm134 = vcmp.eq.f32.partialorder %v129, 0.0
      %v135 = vand.u32 %v129, 2147483648
      %v136 = vsel %vm134, %v135, %v133
      %137 = vst.msk [vmem:[#allocation2] sm:$0x1] %vm123, %v136
    $region21: #{emd_loss.1} parent=1 // pred_fallthru
      _
    // Predicated region
    $region22: #{emd_loss.1} parent=1 // pred_check
      _
    $region23: #{emd_loss.1} parent=1 // pred_check_branch
      %139 = sbr.rel (0) target = $region25
    $region24: #{emd_loss.1} parent=1 // pred_region
      %s141 = ssub.s32 16, 16
      %142 = vsyncadd [#allocation3], %s141
      %s144 = sshll.u32 [#allocation2], 4
      %s145 = int_to_ptr.vmem [resolvable:$true] %s144
      %147 = dma.vmem_to_hbm [thread:$0]  %s145, 16, %s3, [#allocation3]
    $region25: #{emd_loss.1} parent=1 // pred_fallthru
      _
    // Predicated region
    $region26: #{emd_loss.1} parent=1 // pred_check
      _
    $region27: #{emd_loss.1} parent=1 // pred_check_branch
      %149 = sbr.rel (0) target = $region29
    $region28: #{emd_loss.1} parent=1 // pred_region
      %150 = dma.done [#allocation3], 16
    $region29: #{emd_loss.1} parent=1 // pred_fallthru
      _
    %151 = vsyncpa [#allocation3], 1

</llo_original>
